<compile_context>
chip_gen: v7x
topology: tpu7x:2x2x1
jax: 0.10.0
libtpu: 0.0.40
codegen_flags: <defaults>
</compile_context>

<pallas_src>
import jax
import jax.numpy as jnp
import numpy as np
from jax.experimental import pallas as pl
from jax.experimental.pallas import tpu as pltpu


# ----------------------------------------------------------------------------
# Host-side constants (built once per (H, W) and passed as kernel inputs)
# ----------------------------------------------------------------------------
def _conv_edge_masks(H, W):
    """(9, H*W) {0,1} masks: tap t=(dh+1)*3+(dw+1) is valid where the shifted
    pixel (h+dh, w+dw) stays inside the image (zero padding elsewhere)."""
    hh = np.arange(H)[:, None]
    ww = np.arange(W)[None, :]
    masks = []
    for dh in (-1, 0, 1):
        for dw in (-1, 0, 1):
            ok = ((hh + dh >= 0) & (hh + dh < H) &
                  (ww + dw >= 0) & (ww + dw < W))
            masks.append(ok.reshape(-1))
    return np.stack(masks).astype(np.float32)


def _pool_select(H, W):
    """(H*W, Ho*Wo) 0/1 matrix: column (r*Wo+k) selects flat position
    2r*W + 2k, i.e. compacts the stride-2 pooled positions via one matmul."""
    Ho, Wo = H // 2, W // 2
    S = np.zeros((H * W, Ho * Wo), np.float32)
    rows = (2 * np.arange(Ho)[:, None] * W + 2 * np.arange(Wo)[None, :]).reshape(-1)
    S[rows, np.arange(Ho * Wo)] = 1.0
    return S


# ----------------------------------------------------------------------------
# In-kernel helpers
# ----------------------------------------------------------------------------
def _conv3x3_bias_relu(x, w, b, masks, width):
    """3x3 'SAME' conv + bias + ReLU in channels-first, lane-dense layout.

    x:     (Cin, n)   f32, flattened row-major (h*width + w)
    w:     (Cout, 9*Cin) im2col-packed weights
    b:     (Cout, 1)
    masks: (9, n)     {0,1} border-validity masks
    """
    taps = []
    t = 0
    for dh in (-1, 0, 1):
        for dw in (-1, 0, 1):
            s = dh * width + dw
            # lane roll (static shift) brings pixel (h+dh, w+dw) to lane h*W+w;
            # wrapped / out-of-image lanes are zeroed by the mask.
            shifted = x if s == 0 else jnp.roll(x, -s, axis=1)
            taps.append(shifted * masks[t:t + 1, :])
            t += 1
    cols = jnp.concatenate(taps, axis=0)                     # (9*Cin, n)
    y = jnp.dot(w, cols, preferred_element_type=jnp.float32)  # (Cout, n)
    return jnp.maximum(y + b, 0.0)


def _make_features_kernel(H, W):
    Wo = W // 2

    def kernel(x_ref, w0_ref, b0_ref, w3_ref, b3_ref,
               m0_ref, sel_ref, m3_ref, out1_ref, out4_ref):
        x = x_ref[0].astype(jnp.float32)                     # (Cin, H*W)

        # features.0 Conv2d + features.1 ReLU   (hooked "1")
        h1 = _conv3x3_bias_relu(x, w0_ref[...], b0_ref[...], m0_ref[...], W)
        out1_ref[0] = h1.astype(out1_ref.dtype)              # (C0, H*W), NCHW-flat

        # features.2 MaxPool2d(2): pairwise lane-roll maxima, MXU compaction
        m = jnp.maximum(h1, jnp.roll(h1, -1, axis=1))        # max over w pair
        p = jnp.maximum(m, jnp.roll(m, -W, axis=1))          # max over h pair
        pooled = jnp.dot(p, sel_ref[...],
                         preferred_element_type=jnp.float32)  # (C0, Ho*Wo)

        # features.3 Conv2d + features.4 ReLU   (hooked "4")
        h4 = _conv3x3_bias_relu(pooled, w3_ref[...], b3_ref[...], m3_ref[...], Wo)
        out4_ref[0] = h4.astype(out4_ref.dtype)              # (C3, Ho*Wo)

    return kernel


# ----------------------------------------------------------------------------
# pallas_call wrapper (no transposes: outputs are natively NCHW)
# ----------------------------------------------------------------------------
@jax.jit
def _features_forward(x_nchw, w0, b0, w3, b3, m0, sel, m3):
    N, Cin, H, W = x_nchw.shape
    assert H % 2 == 0 and W % 2 == 0, "maxpool2 expects even spatial dims"
    Ho, Wo = H // 2, W // 2
    HW, HWo = H * W, Ho * Wo
    C0, C3 = w0.shape[0], w3.shape[0]

    x_flat = x_nchw.reshape(N, Cin, HW)                      # free reshape

    out1, out4 = pl.pallas_call(
        _make_features_kernel(H, W),
        out_shape=(
            jax.ShapeDtypeStruct((N, C0, HW), x_nchw.dtype),
            jax.ShapeDtypeStruct((N, C3, HWo), x_nchw.dtype),
        ),
        grid=(N,),
        in_specs=[
            pl.BlockSpec((1, Cin, HW), lambda n: (n, 0, 0)),
            pl.BlockSpec((C0, 9 * Cin), lambda n: (0, 0)),
            pl.BlockSpec((C0, 1), lambda n: (0, 0)),
            pl.BlockSpec((C3, 9 * C0), lambda n: (0, 0)),
            pl.BlockSpec((C3, 1), lambda n: (0, 0)),
            pl.BlockSpec((9, HW), lambda n: (0, 0)),
            pl.BlockSpec((HW, HWo), lambda n: (0, 0)),
            pl.BlockSpec((9, HWo), lambda n: (0, 0)),
        ],
        out_specs=(
            pl.BlockSpec((1, C0, HW), lambda n: (n, 0, 0)),
            pl.BlockSpec((1, C3, HWo), lambda n: (n, 0, 0)),
        ),
        compiler_params=pltpu.CompilerParams(
            dimension_semantics=("parallel",)),               # 2 TCs on v7x
    )(x_flat, w0, b0, w3, b3, m0, sel, m3)

    return out1.reshape(N, C0, H, W), out4.reshape(N, C3, Ho, Wo)


# ----------------------------------------------------------------------------
# IntermediateFeatureExtractor equivalent
# ----------------------------------------------------------------------------
class IntermediateFeatureExtractorPallas:
    """Mirrors utils.general.IntermediateFeatureExtractor: runs the wrapped
    model's `features` stack once and records the hooked layers' outputs
    (returned in the model's native NCHW layout)."""

    _SUPPORTED_HOOKS = ("1", "4")  # ReLU outputs emitted by the fused kernel

    def __init__(self, params, layer_names):
        self.layer_names = list(layer_names)
        # TODO(synk): hooks on "0"/"2"/"3" (pre-ReLU conv / pool outputs) would
        # need the fused kernel to emit extra outputs; only the demo's hooked
        # layers are wired up here.
        assert set(self.layer_names) <= set(self._SUPPORTED_HOOKS), \
            f"only hooks {self._SUPPORTED_HOOKS} are supported in the fused kernel"
        w0 = np.asarray(params["w0"], np.float32)   # (3,3,Cin,C0)  HWIO
        b0 = np.asarray(params["b0"], np.float32)
        w3 = np.asarray(params["w3"], np.float32)   # (3,3,C0,C3)
        b3 = np.asarray(params["b3"], np.float32)
        cin, c0 = w0.shape[2], w0.shape[3]
        c3 = w3.shape[3]
        # Pack once into channels-first im2col form (Cout, 9*Cin), bias (Cout, 1).
        self._w0 = jnp.asarray(w0.reshape(9 * cin, c0).T)
        self._b0 = jnp.asarray(b0.reshape(-1, 1))
        self._w3 = jnp.asarray(w3.reshape(9 * c0, c3).T)
        self._b3 = jnp.asarray(b3.reshape(-1, 1))
        self._consts = {}   # (H, W) -> (edge masks conv0, pool select, edge masks conv3)
        self.outputs = {}

    def _get_consts(self, H, W):
        key = (H, W)
        if key not in self._consts:
            self._consts[key] = (
                jnp.asarray(_conv_edge_masks(H, W)),
                jnp.asarray(_pool_select(H, W)),
                jnp.asarray(_conv_edge_masks(H // 2, W // 2)),
            )
        return self._consts[key]

    def __call__(self, x_nchw):
        self.outputs = {}
        H, W = x_nchw.shape[2], x_nchw.shape[3]
        m0, sel, m3 = self._get_consts(H, W)
        out1, out4 = _features_forward(x_nchw, self._w0, self._b0,
                                       self._w3, self._b3, m0, sel, m3)
        hooked = {"1": out1, "4": out4}
        for name in self.layer_names:
            self.outputs[name] = hooked[name]
        return self.outputs


# ----------------------------------------------------------------------------
# Pure-JAX reference (for correctness check only)
# ----------------------------------------------------------------------------
def _ref_forward(x_nchw, params, layer_names):
    h = jnp.transpose(x_nchw, (0, 2, 3, 1))
    outs = {}

    def rec(name, v):
        if name in layer_names:
            outs[name] = jnp.transpose(v, (0, 3, 1, 2))

    def conv(x, w, b):
        return jax.lax.conv_general_dilated(
            x, w, window_strides=(1, 1), padding="SAME",
            dimension_numbers=("NHWC", "HWIO", "NHWC")) + b

    def pool(x):
        return jax.lax.reduce_window(
            x, -jnp.inf, jax.lax.max,
            window_dimensions=(1, 2, 2, 1), window_strides=(1, 2, 2, 1),
            padding="VALID")

    h = conv(h, params["w0"], params["b0"]); rec("0", h)
    h = jnp.maximum(h, 0);                   rec("1", h)
    h = pool(h);                             rec("2", h)
    h = conv(h, params["w3"], params["b3"]); rec("3", h)
    h = jnp.maximum(h, 0);                   rec("4", h)
    return outs


# ----------------------------------------------------------------------------
if __name__ == "__main__":
    N, C_IN, H, W = 2, 4, 16, 16

    key = jax.random.PRNGKey(0)
    kx, k0, k1, k2, k3 = jax.random.split(key, 5)

    x = jax.random.normal(kx, (N, C_IN, H, W), jnp.float32)   # NCHW input

    # Deterministic synthetic parameters (HWIO conv weights).
    params = {
        "w0": 0.1 * jax.random.normal(k0, (3, 3, C_IN, 8), jnp.float32),
        "b0": 0.1 * jax.random.normal(k1, (8,), jnp.float32),
        "w3": 0.1 * jax.random.normal(k2, (3, 3, 8, 16), jnp.float32),
        "b3": 0.1 * jax.random.normal(k3, (16,), jnp.float32),
    }

    layer_names = ["1", "4"]
    extractor = IntermediateFeatureExtractorPallas(params, layer_names)

    outputs = extractor(x)
    outputs = {k: jax.block_until_ready(v) for k, v in outputs.items()}

    # Sanity check against a plain-JAX reference.
    ref = _ref_forward(x, params, layer_names)
    assert set(outputs.keys()) == set(layer_names)
    for name in layer_names:
        np.testing.assert_allclose(np.asarray(outputs[name]),
                                   np.asarray(ref[name]),
                                   rtol=1e-3, atol=1e-3)

    print("KERNEL_OK")
</pallas_src>

<mosaic_0001>
module attributes {stable_mosaic.version = 11 : i64} {
  func.func @kernel(%arg0: i32, %arg1: memref<1x4x256xf32, #tpu.memory_space<vmem>>, %arg2: memref<8x36xf32, #tpu.memory_space<vmem>>, %arg3: memref<8x1xf32, #tpu.memory_space<vmem>>, %arg4: memref<16x72xf32, #tpu.memory_space<vmem>>, %arg5: memref<16x1xf32, #tpu.memory_space<vmem>>, %arg6: memref<9x256xf32, #tpu.memory_space<vmem>>, %arg7: memref<256x64xf32, #tpu.memory_space<vmem>>, %arg8: memref<9x64xf32, #tpu.memory_space<vmem>>, %arg9: memref<1x8x256xf32, #tpu.memory_space<vmem>>, %arg10: memref<1x16x64xf32, #tpu.memory_space<vmem>>) attributes {dimension_semantics = [#tpu.dimension_semantics<parallel>], iteration_bounds = array<i64: 2>, scalar_prefetch = 0 : i64, scratch_operands = 0 : i64, tpu.core_type = #tpu.core_type<tc>, window_params = [{transform_indices = @transform_0, window_bounds = array<i64: 1, 4, 256>}, {pipeline_mode = #tpu.pipeline_mode<synchronous>, transform_indices = @transform_1, window_bounds = array<i64: 8, 36>}, {pipeline_mode = #tpu.pipeline_mode<synchronous>, transform_indices = @transform_2, window_bounds = array<i64: 8, 1>}, {pipeline_mode = #tpu.pipeline_mode<synchronous>, transform_indices = @transform_3, window_bounds = array<i64: 16, 72>}, {pipeline_mode = #tpu.pipeline_mode<synchronous>, transform_indices = @transform_4, window_bounds = array<i64: 16, 1>}, {pipeline_mode = #tpu.pipeline_mode<synchronous>, transform_indices = @transform_5, window_bounds = array<i64: 9, 256>}, {pipeline_mode = #tpu.pipeline_mode<synchronous>, transform_indices = @transform_6, window_bounds = array<i64: 256, 64>}, {pipeline_mode = #tpu.pipeline_mode<synchronous>, transform_indices = @transform_7, window_bounds = array<i64: 9, 64>}, {transform_indices = @transform_8, window_bounds = array<i64: 1, 8, 256>}, {transform_indices = @transform_9, window_bounds = array<i64: 1, 16, 64>}]} {
    %c0 = arith.constant 0 : index
    %c0_0 = arith.constant 0 : index
    %c0_1 = arith.constant 0 : index
    %0 = vector.load %arg1[%c0, %c0_0, %c0_1] : memref<1x4x256xf32, #tpu.memory_space<vmem>>, vector<1x4x256xf32>
    %1 = vector.shape_cast %0 : vector<1x4x256xf32> to vector<4x256xf32>
    %c0_2 = arith.constant 0 : index
    %c0_3 = arith.constant 0 : index
    %2 = vector.load %arg2[%c0_2, %c0_3] : memref<8x36xf32, #tpu.memory_space<vmem>>, vector<8x36xf32>
    %c0_4 = arith.constant 0 : index
    %c0_5 = arith.constant 0 : index
    %3 = vector.load %arg3[%c0_4, %c0_5] : memref<8x1xf32, #tpu.memory_space<vmem>>, vector<8x1xf32>
    %c0_6 = arith.constant 0 : index
    %c0_7 = arith.constant 0 : index
    %4 = vector.load %arg6[%c0_6, %c0_7] : memref<9x256xf32, #tpu.memory_space<vmem>>, vector<9x256xf32>
    %5 = vector.extract_strided_slice %1 {offsets = [0, 239], sizes = [4, 17], strides = [1, 1]} : vector<4x256xf32> to vector<4x17xf32>
    %6 = vector.extract_strided_slice %1 {offsets = [0, 0], sizes = [4, 239], strides = [1, 1]} : vector<4x256xf32> to vector<4x239xf32>
    %7 = tpu.concatenate %5, %6 in 1 : vector<4x17xf32>, vector<4x239xf32> -> vector<4x256xf32>
    %8 = vector.extract_strided_slice %4 {offsets = [0, 0], sizes = [1, 256], strides = [1, 1]} : vector<9x256xf32> to vector<1x256xf32>
    %9 = vector.broadcast %8 : vector<1x256xf32> to vector<4x256xf32>
    %10 = arith.mulf %7, %9 : vector<4x256xf32>
    %11 = vector.extract_strided_slice %1 {offsets = [0, 240], sizes = [4, 16], strides = [1, 1]} : vector<4x256xf32> to vector<4x16xf32>
    %12 = vector.extract_strided_slice %1 {offsets = [0, 0], sizes = [4, 240], strides = [1, 1]} : vector<4x256xf32> to vector<4x240xf32>
    %13 = tpu.concatenate %11, %12 in 1 : vector<4x16xf32>, vector<4x240xf32> -> vector<4x256xf32>
    %14 = vector.extract_strided_slice %4 {offsets = [1, 0], sizes = [1, 256], strides = [1, 1]} : vector<9x256xf32> to vector<1x256xf32>
    %15 = vector.broadcast %14 : vector<1x256xf32> to vector<4x256xf32>
    %16 = arith.mulf %13, %15 : vector<4x256xf32>
    %17 = vector.extract_strided_slice %1 {offsets = [0, 241], sizes = [4, 15], strides = [1, 1]} : vector<4x256xf32> to vector<4x15xf32>
    %18 = vector.extract_strided_slice %1 {offsets = [0, 0], sizes = [4, 241], strides = [1, 1]} : vector<4x256xf32> to vector<4x241xf32>
    %19 = tpu.concatenate %17, %18 in 1 : vector<4x15xf32>, vector<4x241xf32> -> vector<4x256xf32>
    %20 = vector.extract_strided_slice %4 {offsets = [2, 0], sizes = [1, 256], strides = [1, 1]} : vector<9x256xf32> to vector<1x256xf32>
    %21 = vector.broadcast %20 : vector<1x256xf32> to vector<4x256xf32>
    %22 = arith.mulf %19, %21 : vector<4x256xf32>
    %23 = vector.extract_strided_slice %1 {offsets = [0, 255], sizes = [4, 1], strides = [1, 1]} : vector<4x256xf32> to vector<4x1xf32>
    %24 = vector.extract_strided_slice %1 {offsets = [0, 0], sizes = [4, 255], strides = [1, 1]} : vector<4x256xf32> to vector<4x255xf32>
    %25 = tpu.concatenate %23, %24 in 1 : vector<4x1xf32>, vector<4x255xf32> -> vector<4x256xf32>
    %26 = vector.extract_strided_slice %4 {offsets = [3, 0], sizes = [1, 256], strides = [1, 1]} : vector<9x256xf32> to vector<1x256xf32>
    %27 = vector.broadcast %26 : vector<1x256xf32> to vector<4x256xf32>
    %28 = arith.mulf %25, %27 : vector<4x256xf32>
    %29 = vector.extract_strided_slice %4 {offsets = [4, 0], sizes = [1, 256], strides = [1, 1]} : vector<9x256xf32> to vector<1x256xf32>
    %30 = vector.broadcast %29 : vector<1x256xf32> to vector<4x256xf32>
    %31 = arith.mulf %1, %30 : vector<4x256xf32>
    %32 = vector.extract_strided_slice %1 {offsets = [0, 1], sizes = [4, 255], strides = [1, 1]} : vector<4x256xf32> to vector<4x255xf32>
    %33 = vector.extract_strided_slice %1 {offsets = [0, 0], sizes = [4, 1], strides = [1, 1]} : vector<4x256xf32> to vector<4x1xf32>
    %34 = tpu.concatenate %32, %33 in 1 : vector<4x255xf32>, vector<4x1xf32> -> vector<4x256xf32>
    %35 = vector.extract_strided_slice %4 {offsets = [5, 0], sizes = [1, 256], strides = [1, 1]} : vector<9x256xf32> to vector<1x256xf32>
    %36 = vector.broadcast %35 : vector<1x256xf32> to vector<4x256xf32>
    %37 = arith.mulf %34, %36 : vector<4x256xf32>
    %38 = vector.extract_strided_slice %1 {offsets = [0, 15], sizes = [4, 241], strides = [1, 1]} : vector<4x256xf32> to vector<4x241xf32>
    %39 = vector.extract_strided_slice %1 {offsets = [0, 0], sizes = [4, 15], strides = [1, 1]} : vector<4x256xf32> to vector<4x15xf32>
    %40 = tpu.concatenate %38, %39 in 1 : vector<4x241xf32>, vector<4x15xf32> -> vector<4x256xf32>
    %41 = vector.extract_strided_slice %4 {offsets = [6, 0], sizes = [1, 256], strides = [1, 1]} : vector<9x256xf32> to vector<1x256xf32>
    %42 = vector.broadcast %41 : vector<1x256xf32> to vector<4x256xf32>
    %43 = arith.mulf %40, %42 : vector<4x256xf32>
    %44 = vector.extract_strided_slice %1 {offsets = [0, 16], sizes = [4, 240], strides = [1, 1]} : vector<4x256xf32> to vector<4x240xf32>
    %45 = vector.extract_strided_slice %1 {offsets = [0, 0], sizes = [4, 16], strides = [1, 1]} : vector<4x256xf32> to vector<4x16xf32>
    %46 = tpu.concatenate %44, %45 in 1 : vector<4x240xf32>, vector<4x16xf32> -> vector<4x256xf32>
    %47 = vector.extract_strided_slice %4 {offsets = [7, 0], sizes = [1, 256], strides = [1, 1]} : vector<9x256xf32> to vector<1x256xf32>
    %48 = vector.broadcast %47 : vector<1x256xf32> to vector<4x256xf32>
    %49 = arith.mulf %46, %48 : vector<4x256xf32>
    %50 = vector.extract_strided_slice %1 {offsets = [0, 17], sizes = [4, 239], strides = [1, 1]} : vector<4x256xf32> to vector<4x239xf32>
    %51 = vector.extract_strided_slice %1 {offsets = [0, 0], sizes = [4, 17], strides = [1, 1]} : vector<4x256xf32> to vector<4x17xf32>
    %52 = tpu.concatenate %50, %51 in 1 : vector<4x239xf32>, vector<4x17xf32> -> vector<4x256xf32>
    %53 = vector.extract_strided_slice %4 {offsets = [8, 0], sizes = [1, 256], strides = [1, 1]} : vector<9x256xf32> to vector<1x256xf32>
    %54 = vector.broadcast %53 : vector<1x256xf32> to vector<4x256xf32>
    %55 = arith.mulf %52, %54 : vector<4x256xf32>
    %56 = tpu.concatenate %10, %16, %22, %28, %31, %37, %43, %49, %55 in 0 : vector<4x256xf32>, vector<4x256xf32>, vector<4x256xf32>, vector<4x256xf32>, vector<4x256xf32>, vector<4x256xf32>, vector<4x256xf32>, vector<4x256xf32>, vector<4x256xf32> -> vector<36x256xf32>
    %cst = arith.constant dense<0.000000e+00> : vector<8x256xf32>
    %57 = tpu.matmul %2, %56, %cst {dimension_numbers = #tpu.dot_dimension_numbers<[1], [0], [0], [1], [0, 0, 1, 1], [], []>} : vector<8x36xf32>, vector<36x256xf32>, vector<8x256xf32> -> vector<8x256xf32>
    %58 = vector.broadcast %3 : vector<8x1xf32> to vector<8x256xf32>
    %59 = arith.addf %57, %58 : vector<8x256xf32>
    %cst_8 = arith.constant 0.000000e+00 : f32
    %60 = vector.broadcast %cst_8 : f32 to vector<8x256xf32>
    %61 = arith.maximumf %59, %60 : vector<8x256xf32>
    %c0_9 = arith.constant 0 : index
    %c0_10 = arith.constant 0 : index
    %c0_11 = arith.constant 0 : index
    %62 = vector.load %arg9[%c0_9, %c0_10, %c0_11] : memref<1x8x256xf32, #tpu.memory_space<vmem>>, vector<1x8x256xf32>
    %63 = vector.shape_cast %62 : vector<1x8x256xf32> to vector<8x256xf32>
    %64 = vector.shape_cast %61 : vector<8x256xf32> to vector<1x8x256xf32>
    tpu.vector_store %arg9[%c0_9, %c0_10, %c0_11], %64 {strides = array<i32>} : memref<1x8x256xf32, #tpu.memory_space<vmem>>, vector<1x8x256xf32>,
    %65 = vector.extract_strided_slice %61 {offsets = [0, 1], sizes = [8, 255], strides = [1, 1]} : vector<8x256xf32> to vector<8x255xf32>
    %66 = vector.extract_strided_slice %61 {offsets = [0, 0], sizes = [8, 1], strides = [1, 1]} : vector<8x256xf32> to vector<8x1xf32>
    %67 = tpu.concatenate %65, %66 in 1 : vector<8x255xf32>, vector<8x1xf32> -> vector<8x256xf32>
    %68 = arith.maximumf %61, %67 : vector<8x256xf32>
    %69 = vector.extract_strided_slice %68 {offsets = [0, 16], sizes = [8, 240], strides = [1, 1]} : vector<8x256xf32> to vector<8x240xf32>
    %70 = vector.extract_strided_slice %68 {offsets = [0, 0], sizes = [8, 16], strides = [1, 1]} : vector<8x256xf32> to vector<8x16xf32>
    %71 = tpu.concatenate %69, %70 in 1 : vector<8x240xf32>, vector<8x16xf32> -> vector<8x256xf32>
    %72 = arith.maximumf %68, %71 : vector<8x256xf32>
    %c0_12 = arith.constant 0 : index
    %c0_13 = arith.constant 0 : index
    %73 = vector.load %arg7[%c0_12, %c0_13] : memref<256x64xf32, #tpu.memory_space<vmem>>, vector<256x64xf32>
    %cst_14 = arith.constant dense<0.000000e+00> : vector<8x64xf32>
    %74 = tpu.matmul %72, %73, %cst_14 {dimension_numbers = #tpu.dot_dimension_numbers<[1], [0], [0], [1], [0, 0, 1, 1], [], []>} : vector<8x256xf32>, vector<256x64xf32>, vector<8x64xf32> -> vector<8x64xf32>
    %c0_15 = arith.constant 0 : index
    %c0_16 = arith.constant 0 : index
    %75 = vector.load %arg4[%c0_15, %c0_16] : memref<16x72xf32, #tpu.memory_space<vmem>>, vector<16x72xf32>
    %c0_17 = arith.constant 0 : index
    %c0_18 = arith.constant 0 : index
    %76 = vector.load %arg5[%c0_17, %c0_18] : memref<16x1xf32, #tpu.memory_space<vmem>>, vector<16x1xf32>
    %c0_19 = arith.constant 0 : index
    %c0_20 = arith.constant 0 : index
    %77 = vector.load %arg8[%c0_19, %c0_20] : memref<9x64xf32, #tpu.memory_space<vmem>>, vector<9x64xf32>
    %78 = vector.extract_strided_slice %74 {offsets = [0, 55], sizes = [8, 9], strides = [1, 1]} : vector<8x64xf32> to vector<8x9xf32>
    %79 = vector.extract_strided_slice %74 {offsets = [0, 0], sizes = [8, 55], strides = [1, 1]} : vector<8x64xf32> to vector<8x55xf32>
    %80 = tpu.concatenate %78, %79 in 1 : vector<8x9xf32>, vector<8x55xf32> -> vector<8x64xf32>
    %81 = vector.extract_strided_slice %77 {offsets = [0, 0], sizes = [1, 64], strides = [1, 1]} : vector<9x64xf32> to vector<1x64xf32>
    %82 = vector.broadcast %81 : vector<1x64xf32> to vector<8x64xf32>
    %83 = arith.mulf %80, %82 : vector<8x64xf32>
    %84 = vector.extract_strided_slice %74 {offsets = [0, 56], sizes = [8, 8], strides = [1, 1]} : vector<8x64xf32> to vector<8x8xf32>
    %85 = vector.extract_strided_slice %74 {offsets = [0, 0], sizes = [8, 56], strides = [1, 1]} : vector<8x64xf32> to vector<8x56xf32>
    %86 = tpu.concatenate %84, %85 in 1 : vector<8x8xf32>, vector<8x56xf32> -> vector<8x64xf32>
    %87 = vector.extract_strided_slice %77 {offsets = [1, 0], sizes = [1, 64], strides = [1, 1]} : vector<9x64xf32> to vector<1x64xf32>
    %88 = vector.broadcast %87 : vector<1x64xf32> to vector<8x64xf32>
    %89 = arith.mulf %86, %88 : vector<8x64xf32>
    %90 = vector.extract_strided_slice %74 {offsets = [0, 57], sizes = [8, 7], strides = [1, 1]} : vector<8x64xf32> to vector<8x7xf32>
    %91 = vector.extract_strided_slice %74 {offsets = [0, 0], sizes = [8, 57], strides = [1, 1]} : vector<8x64xf32> to vector<8x57xf32>
    %92 = tpu.concatenate %90, %91 in 1 : vector<8x7xf32>, vector<8x57xf32> -> vector<8x64xf32>
    %93 = vector.extract_strided_slice %77 {offsets = [2, 0], sizes = [1, 64], strides = [1, 1]} : vector<9x64xf32> to vector<1x64xf32>
    %94 = vector.broadcast %93 : vector<1x64xf32> to vector<8x64xf32>
    %95 = arith.mulf %92, %94 : vector<8x64xf32>
    %96 = vector.extract_strided_slice %74 {offsets = [0, 63], sizes = [8, 1], strides = [1, 1]} : vector<8x64xf32> to vector<8x1xf32>
    %97 = vector.extract_strided_slice %74 {offsets = [0, 0], sizes = [8, 63], strides = [1, 1]} : vector<8x64xf32> to vector<8x63xf32>
    %98 = tpu.concatenate %96, %97 in 1 : vector<8x1xf32>, vector<8x63xf32> -> vector<8x64xf32>
    %99 = vector.extract_strided_slice %77 {offsets = [3, 0], sizes = [1, 64], strides = [1, 1]} : vector<9x64xf32> to vector<1x64xf32>
    %100 = vector.broadcast %99 : vector<1x64xf32> to vector<8x64xf32>
    %101 = arith.mulf %98, %100 : vector<8x64xf32>
    %102 = vector.extract_strided_slice %77 {offsets = [4, 0], sizes = [1, 64], strides = [1, 1]} : vector<9x64xf32> to vector<1x64xf32>
    %103 = vector.broadcast %102 : vector<1x64xf32> to vector<8x64xf32>
    %104 = arith.mulf %74, %103 : vector<8x64xf32>
    %105 = vector.extract_strided_slice %74 {offsets = [0, 1], sizes = [8, 63], strides = [1, 1]} : vector<8x64xf32> to vector<8x63xf32>
    %106 = vector.extract_strided_slice %74 {offsets = [0, 0], sizes = [8, 1], strides = [1, 1]} : vector<8x64xf32> to vector<8x1xf32>
    %107 = tpu.concatenate %105, %106 in 1 : vector<8x63xf32>, vector<8x1xf32> -> vector<8x64xf32>
    %108 = vector.extract_strided_slice %77 {offsets = [5, 0], sizes = [1, 64], strides = [1, 1]} : vector<9x64xf32> to vector<1x64xf32>
    %109 = vector.broadcast %108 : vector<1x64xf32> to vector<8x64xf32>
    %110 = arith.mulf %107, %109 : vector<8x64xf32>
    %111 = vector.extract_strided_slice %74 {offsets = [0, 7], sizes = [8, 57], strides = [1, 1]} : vector<8x64xf32> to vector<8x57xf32>
    %112 = vector.extract_strided_slice %74 {offsets = [0, 0], sizes = [8, 7], strides = [1, 1]} : vector<8x64xf32> to vector<8x7xf32>
    %113 = tpu.concatenate %111, %112 in 1 : vector<8x57xf32>, vector<8x7xf32> -> vector<8x64xf32>
    %114 = vector.extract_strided_slice %77 {offsets = [6, 0], sizes = [1, 64], strides = [1, 1]} : vector<9x64xf32> to vector<1x64xf32>
    %115 = vector.broadcast %114 : vector<1x64xf32> to vector<8x64xf32>
    %116 = arith.mulf %113, %115 : vector<8x64xf32>
    %117 = vector.extract_strided_slice %74 {offsets = [0, 8], sizes = [8, 56], strides = [1, 1]} : vector<8x64xf32> to vector<8x56xf32>
    %118 = vector.extract_strided_slice %74 {offsets = [0, 0], sizes = [8, 8], strides = [1, 1]} : vector<8x64xf32> to vector<8x8xf32>
    %119 = tpu.concatenate %117, %118 in 1 : vector<8x56xf32>, vector<8x8xf32> -> vector<8x64xf32>
    %120 = vector.extract_strided_slice %77 {offsets = [7, 0], sizes = [1, 64], strides = [1, 1]} : vector<9x64xf32> to vector<1x64xf32>
    %121 = vector.broadcast %120 : vector<1x64xf32> to vector<8x64xf32>
    %122 = arith.mulf %119, %121 : vector<8x64xf32>
    %123 = vector.extract_strided_slice %74 {offsets = [0, 9], sizes = [8, 55], strides = [1, 1]} : vector<8x64xf32> to vector<8x55xf32>
    %124 = vector.extract_strided_slice %74 {offsets = [0, 0], sizes = [8, 9], strides = [1, 1]} : vector<8x64xf32> to vector<8x9xf32>
    %125 = tpu.concatenate %123, %124 in 1 : vector<8x55xf32>, vector<8x9xf32> -> vector<8x64xf32>
    %126 = vector.extract_strided_slice %77 {offsets = [8, 0], sizes = [1, 64], strides = [1, 1]} : vector<9x64xf32> to vector<1x64xf32>
    %127 = vector.broadcast %126 : vector<1x64xf32> to vector<8x64xf32>
    %128 = arith.mulf %125, %127 : vector<8x64xf32>
    %129 = tpu.concatenate %83, %89, %95, %101, %104, %110, %116, %122, %128 in 0 : vector<8x64xf32>, vector<8x64xf32>, vector<8x64xf32>, vector<8x64xf32>, vector<8x64xf32>, vector<8x64xf32>, vector<8x64xf32>, vector<8x64xf32>, vector<8x64xf32> -> vector<72x64xf32>
    %cst_21 = arith.constant dense<0.000000e+00> : vector<16x64xf32>
    %130 = tpu.matmul %75, %129, %cst_21 {dimension_numbers = #tpu.dot_dimension_numbers<[1], [0], [0], [1], [0, 0, 1, 1], [], []>} : vector<16x72xf32>, vector<72x64xf32>, vector<16x64xf32> -> vector<16x64xf32>
    %131 = vector.broadcast %76 : vector<16x1xf32> to vector<16x64xf32>
    %132 = arith.addf %130, %131 : vector<16x64xf32>
    %cst_22 = arith.constant 0.000000e+00 : f32
    %133 = vector.broadcast %cst_22 : f32 to vector<16x64xf32>
    %134 = arith.maximumf %132, %133 : vector<16x64xf32>
    %c0_23 = arith.constant 0 : index
    %c0_24 = arith.constant 0 : index
    %c0_25 = arith.constant 0 : index
    %135 = vector.load %arg10[%c0_23, %c0_24, %c0_25] : memref<1x16x64xf32, #tpu.memory_space<vmem>>, vector<1x16x64xf32>
    %136 = vector.shape_cast %135 : vector<1x16x64xf32> to vector<16x64xf32>
    %137 = vector.shape_cast %134 : vector<16x64xf32> to vector<1x16x64xf32>
    tpu.vector_store %arg10[%c0_23, %c0_24, %c0_25], %137 {strides = array<i32>} : memref<1x16x64xf32, #tpu.memory_space<vmem>>, vector<1x16x64xf32>,
    return
  }
  func.func @transform_0(%arg0: i32) -> (i32, i32, i32) {
    %c0_i32 = arith.constant 0 : i32
    %c0_i32_0 = arith.constant 0 : i32
    %c0_i32_1 = arith.constant 0 : i32
    return %arg0, %c0_i32, %c0_i32_0 : i32, i32, i32
  }
  func.func @transform_1(%arg0: i32) -> (i32, i32) {
    %c0_i32 = arith.constant 0 : i32
    %c0_i32_0 = arith.constant 0 : i32
    %c0_i32_1 = arith.constant 0 : i32
    return %c0_i32, %c0_i32_0 : i32, i32
  }
  func.func @transform_2(%arg0: i32) -> (i32, i32) {
    %c0_i32 = arith.constant 0 : i32
    %c0_i32_0 = arith.constant 0 : i32
    %c0_i32_1 = arith.constant 0 : i32
    return %c0_i32, %c0_i32_0 : i32, i32
  }
  func.func @transform_3(%arg0: i32) -> (i32, i32) {
    %c0_i32 = arith.constant 0 : i32
    %c0_i32_0 = arith.constant 0 : i32
    %c0_i32_1 = arith.constant 0 : i32
    return %c0_i32, %c0_i32_0 : i32, i32
  }
  func.func @transform_4(%arg0: i32) -> (i32, i32) {
    %c0_i32 = arith.constant 0 : i32
    %c0_i32_0 = arith.constant 0 : i32
    %c0_i32_1 = arith.constant 0 : i32
    return %c0_i32, %c0_i32_0 : i32, i32
  }
  func.func @transform_5(%arg0: i32) -> (i32, i32) {
    %c0_i32 = arith.constant 0 : i32
    %c0_i32_0 = arith.constant 0 : i32
    %c0_i32_1 = arith.constant 0 : i32
    return %c0_i32, %c0_i32_0 : i32, i32
  }
  func.func @transform_6(%arg0: i32) -> (i32, i32) {
    %c0_i32 = arith.constant 0 : i32
    %c0_i32_0 = arith.constant 0 : i32
    %c0_i32_1 = arith.constant 0 : i32
    return %c0_i32, %c0_i32_0 : i32, i32
  }
  func.func @transform_7(%arg0: i32) -> (i32, i32) {
    %c0_i32 = arith.constant 0 : i32
    %c0_i32_0 = arith.constant 0 : i32
    %c0_i32_1 = arith.constant 0 : i32
    return %c0_i32, %c0_i32_0 : i32, i32
  }
  func.func @transform_8(%arg0: i32) -> (i32, i32, i32) {
    %c0_i32 = arith.constant 0 : i32
    %c0_i32_0 = arith.constant 0 : i32
    %c0_i32_1 = arith.constant 0 : i32
    return %arg0, %c0_i32, %c0_i32_0 : i32, i32, i32
  }
  func.func @transform_9(%arg0: i32) -> (i32, i32, i32) {
    %c0_i32 = arith.constant 0 : i32
    %c0_i32_0 = arith.constant 0 : i32
    %c0_i32_1 = arith.constant 0 : i32
    return %arg0, %c0_i32, %c0_i32_0 : i32, i32, i32
  }
}

</mosaic_0001>

<llo_original>
// kernel: _features_forward.1
$region0: #{_features_forward.1}
  #allocation0 [shape = 'u32[]', space=smem, size = 0x4, offset = 0x4, fixed_abs, tag = 'smem constant byte address 0x4 - core index']
  #allocation1 [shape = 'u32[144,128]{1,0:T(1,128)}', space=vmem, size = 0x12000, scoped, tag = 'internal scratch']
  %s0 = inlined_call_operand.vmem [shape: f32[2,4,256], index: 0, kind: input, shape index: {}]
  %s1 = inlined_call_operand.vmem [shape: f32[8,36], index: 1, kind: input, shape index: {}]
  %s2 = inlined_call_operand.vmem [shape: f32[8,1], index: 2, kind: input, shape index: {}]
  %s3 = inlined_call_operand.vmem [shape: f32[16,72], index: 3, kind: input, shape index: {}]
  %s4 = inlined_call_operand.vmem [shape: f32[16,1], index: 4, kind: input, shape index: {}]
  %s5 = inlined_call_operand.vmem [shape: f32[9,256], index: 5, kind: input, shape index: {}]
  %s6 = inlined_call_operand.vmem [shape: f32[256,64], index: 6, kind: input, shape index: {}]
  %s7 = inlined_call_operand.vmem [shape: f32[9,64], index: 7, kind: input, shape index: {}]
  %s8 = inlined_call_operand.vmem [shape: f32[2,8,256], index: 8, kind: output, shape index: {0}]
  %s9 = inlined_call_operand.vmem [shape: f32[2,16,64], index: 9, kind: output, shape index: {1}]
  %10 = xla_tuple %s8, %s9
  %s11 = sld [smem:[#allocation0]]
  $region73: #{_features_forward.1} parent=0
    _
  %s13 = ssub.s32 1, %s11
  %s14 = scalar_select 0, %s13, %s11
  loop: start=0, step=1, limit=4
  $region2: #{_features_forward.1} parent=0 // loop_pre_header
    _
  $region3: #{_features_forward.1} parent=0 // loop_header
    %s16 = sphi 0, %s20
    %p17 = scmp.ge.s32.totalorder %s16, 4
    %s26 = sphi 0, %s28
    %s29 = sphi 0, %s26
    %s30 = sphi 0, %s29
    %s46 = sphi 0, %s30
    %s50 = sphi 0, %s50
    %s52 = sphi 0, %s50
    %s53 = sphi 0, %s52
    %s67 = sphi 0, %s53
    %s71 = sphi 0, %s71
    %s73 = sphi 0, %s71
    %s74 = sphi 0, %s73
    %s88 = sphi 0, %s74
    %s92 = sphi 0, %s92
    %s94 = sphi 0, %s92
    %s95 = sphi 0, %s94
    %s109 = sphi 0, %s95
    %s113 = sphi 0, %s113
    %s115 = sphi 0, %s113
    %s116 = sphi 0, %s115
    %s130 = sphi 0, %s116
    %s134 = sphi 0, %s134
    %s136 = sphi 0, %s134
    %s137 = sphi 0, %s136
    %s151 = sphi 0, %s137
    %s155 = sphi 0, %s155
    %s157 = sphi 0, %s155
    %s158 = sphi 0, %s157
    %s172 = sphi 0, %s158
    %s176 = sphi 0, %s176
    %s178 = sphi 0, %s176
    %s179 = sphi 0, %s178
    %s193 = sphi 0, %s179
    %s199 = sphi 0, %s201
    %s202 = sphi 0, %s199
    %s203 = sphi 0, %s202
    %s219 = sphi 0, %s203
    %s225 = sphi 0, %s227
    %s228 = sphi 0, %s225
    %s229 = sphi 0, %s228
    %s245 = sphi 0, %s229
  $region4: #{_features_forward.1} parent=0 // loop_header_branch
    %19 = sbr.rel (%p17) target = $region8
  $region5: #{_features_forward.1} parent=0 // loop_body
    %s21 = ssub.s32 %s16, 1
    %s22 = ssub.s32 %s16, 2
    %s23 = sadd.s32 %s16, 1
    %s24 = ssub.s32 %s16, %s23
    %p25 = scmp.eq.s32.totalorder %s24, 0
    %s27 = sadd.s32 %s26, 1
    %s28 = scalar_select %p25, %s26, %s27
    %p31 = pneg %p25
    %p32 = scmp.eq.s32.totalorder %s16, 1
    %p33 = por %p31, %p32
    %p34 = scmp.ne.s32.totalorder %s26, %s29
    %p35 = scmp.eq.s32.totalorder %s16, 0
    %p36 = por %p34, %p35
    %p37 = scmp.ne.s32.totalorder %s26, %s29
    %p38 = scmp.eq.s32.totalorder %s21, 1
    %p39 = por %p37, %p38
    %p40 = scmp.ne.s32.totalorder %s29, %s30
    %p41 = scmp.eq.s32.totalorder %s21, 0
    %p42 = por %p40, %p41
    %p43 = scmp.ne.s32.totalorder %s29, %s30
    %p44 = scmp.eq.s32.totalorder %s22, 1
    %p45 = por %p43, %p44
    %p47 = scmp.ne.s32.totalorder %s30, %s46
    %p48 = scmp.eq.s32.totalorder %s22, 0
    %p49 = por %p47, %p48
    %s51 = sadd.s32 %s50, 1
    %p54 = scmp.eq.s32.totalorder %s16, 1
    %p55 = scmp.ne.s32.totalorder %s50, %s52
    %p56 = scmp.eq.s32.totalorder %s16, 0
    %p57 = por %p55, %p56
    %p58 = scmp.ne.s32.totalorder %s50, %s52
    %p59 = scmp.eq.s32.totalorder %s21, 1
    %p60 = por %p58, %p59
    %p61 = scmp.ne.s32.totalorder %s52, %s53
    %p62 = scmp.eq.s32.totalorder %s21, 0
    %p63 = por %p61, %p62
    %p64 = scmp.ne.s32.totalorder %s52, %s53
    %p65 = scmp.eq.s32.totalorder %s22, 1
    %p66 = por %p64, %p65
    %p68 = scmp.ne.s32.totalorder %s53, %s67
    %p69 = scmp.eq.s32.totalorder %s22, 0
    %p70 = por %p68, %p69
    %s72 = sadd.s32 %s71, 1
    %p75 = scmp.eq.s32.totalorder %s16, 1
    %p76 = scmp.ne.s32.totalorder %s71, %s73
    %p77 = scmp.eq.s32.totalorder %s16, 0
    %p78 = por %p76, %p77
    %p79 = scmp.ne.s32.totalorder %s71, %s73
    %p80 = scmp.eq.s32.totalorder %s21, 1
    %p81 = por %p79, %p80
    %p82 = scmp.ne.s32.totalorder %s73, %s74
    %p83 = scmp.eq.s32.totalorder %s21, 0
    %p84 = por %p82, %p83
    %p85 = scmp.ne.s32.totalorder %s73, %s74
    %p86 = scmp.eq.s32.totalorder %s22, 1
    %p87 = por %p85, %p86
    %p89 = scmp.ne.s32.totalorder %s74, %s88
    %p90 = scmp.eq.s32.totalorder %s22, 0
    %p91 = por %p89, %p90
    %s93 = sadd.s32 %s92, 1
    %p96 = scmp.eq.s32.totalorder %s16, 1
    %p97 = scmp.ne.s32.totalorder %s92, %s94
    %p98 = scmp.eq.s32.totalorder %s16, 0
    %p99 = por %p97, %p98
    %p100 = scmp.ne.s32.totalorder %s92, %s94
    %p101 = scmp.eq.s32.totalorder %s21, 1
    %p102 = por %p100, %p101
    %p103 = scmp.ne.s32.totalorder %s94, %s95
    %p104 = scmp.eq.s32.totalorder %s21, 0
    %p105 = por %p103, %p104
    %p106 = scmp.ne.s32.totalorder %s94, %s95
    %p107 = scmp.eq.s32.totalorder %s22, 1
    %p108 = por %p106, %p107
    %p110 = scmp.ne.s32.totalorder %s95, %s109
    %p111 = scmp.eq.s32.totalorder %s22, 0
    %p112 = por %p110, %p111
    %s114 = sadd.s32 %s113, 1
    %p117 = scmp.eq.s32.totalorder %s16, 1
    %p118 = scmp.ne.s32.totalorder %s113, %s115
    %p119 = scmp.eq.s32.totalorder %s16, 0
    %p120 = por %p118, %p119
    %p121 = scmp.ne.s32.totalorder %s113, %s115
    %p122 = scmp.eq.s32.totalorder %s21, 1
    %p123 = por %p121, %p122
    %p124 = scmp.ne.s32.totalorder %s115, %s116
    %p125 = scmp.eq.s32.totalorder %s21, 0
    %p126 = por %p124, %p125
    %p127 = scmp.ne.s32.totalorder %s115, %s116
    %p128 = scmp.eq.s32.totalorder %s22, 1
    %p129 = por %p127, %p128
    %p131 = scmp.ne.s32.totalorder %s116, %s130
    %p132 = scmp.eq.s32.totalorder %s22, 0
    %p133 = por %p131, %p132
    %s135 = sadd.s32 %s134, 1
    %p138 = scmp.eq.s32.totalorder %s16, 1
    %p139 = scmp.ne.s32.totalorder %s134, %s136
    %p140 = scmp.eq.s32.totalorder %s16, 0
    %p141 = por %p139, %p140
    %p142 = scmp.ne.s32.totalorder %s134, %s136
    %p143 = scmp.eq.s32.totalorder %s21, 1
    %p144 = por %p142, %p143
    %p145 = scmp.ne.s32.totalorder %s136, %s137
    %p146 = scmp.eq.s32.totalorder %s21, 0
    %p147 = por %p145, %p146
    %p148 = scmp.ne.s32.totalorder %s136, %s137
    %p149 = scmp.eq.s32.totalorder %s22, 1
    %p150 = por %p148, %p149
    %p152 = scmp.ne.s32.totalorder %s137, %s151
    %p153 = scmp.eq.s32.totalorder %s22, 0
    %p154 = por %p152, %p153
    %s156 = sadd.s32 %s155, 1
    %p159 = scmp.eq.s32.totalorder %s16, 1
    %p160 = scmp.ne.s32.totalorder %s155, %s157
    %p161 = scmp.eq.s32.totalorder %s16, 0
    %p162 = por %p160, %p161
    %p163 = scmp.ne.s32.totalorder %s155, %s157
    %p164 = scmp.eq.s32.totalorder %s21, 1
    %p165 = por %p163, %p164
    %p166 = scmp.ne.s32.totalorder %s157, %s158
    %p167 = scmp.eq.s32.totalorder %s21, 0
    %p168 = por %p166, %p167
    %p169 = scmp.ne.s32.totalorder %s157, %s158
    %p170 = scmp.eq.s32.totalorder %s22, 1
    %p171 = por %p169, %p170
    %p173 = scmp.ne.s32.totalorder %s158, %s172
    %p174 = scmp.eq.s32.totalorder %s22, 0
    %p175 = por %p173, %p174
    %s177 = sadd.s32 %s176, 1
    %p180 = scmp.eq.s32.totalorder %s16, 1
    %p181 = scmp.ne.s32.totalorder %s176, %s178
    %p182 = scmp.eq.s32.totalorder %s16, 0
    %p183 = por %p181, %p182
    %p184 = scmp.ne.s32.totalorder %s176, %s178
    %p185 = scmp.eq.s32.totalorder %s21, 1
    %p186 = por %p184, %p185
    %p187 = scmp.ne.s32.totalorder %s178, %s179
    %p188 = scmp.eq.s32.totalorder %s21, 0
    %p189 = por %p187, %p188
    %p190 = scmp.ne.s32.totalorder %s178, %s179
    %p191 = scmp.eq.s32.totalorder %s22, 1
    %p192 = por %p190, %p191
    %p194 = scmp.ne.s32.totalorder %s179, %s193
    %p195 = scmp.eq.s32.totalorder %s22, 0
    %p196 = por %p194, %p195
    %s197 = ssub.s32 %s16, %s23
    %p198 = scmp.eq.s32.totalorder %s197, 0
    %s200 = sadd.s32 %s199, 1
    %s201 = scalar_select %p198, %s199, %s200
    %p204 = pneg %p198
    %p205 = scmp.eq.s32.totalorder %s16, 1
    %p206 = por %p204, %p205
    %p207 = scmp.ne.s32.totalorder %s199, %s202
    %p208 = scmp.eq.s32.totalorder %s16, 0
    %p209 = por %p207, %p208
    %p210 = scmp.ne.s32.totalorder %s199, %s202
    %p211 = scmp.eq.s32.totalorder %s21, 1
    %p212 = por %p210, %p211
    %p213 = scmp.ne.s32.totalorder %s202, %s203
    %p214 = scmp.eq.s32.totalorder %s21, 0
    %p215 = por %p213, %p214
    %p216 = scmp.ne.s32.totalorder %s202, %s203
    %p217 = scmp.eq.s32.totalorder %s22, 1
    %p218 = por %p216, %p217
    %p220 = scmp.ne.s32.totalorder %s203, %s219
    %p221 = scmp.eq.s32.totalorder %s22, 0
    %p222 = por %p220, %p221
    %s223 = ssub.s32 %s16, %s23
    %p224 = scmp.eq.s32.totalorder %s223, 0
    %s226 = sadd.s32 %s225, 1
    %s227 = scalar_select %p224, %s225, %s226
    %p230 = pneg %p224
    %p231 = scmp.eq.s32.totalorder %s16, 1
    %p232 = por %p230, %p231
    %p233 = scmp.ne.s32.totalorder %s225, %s228
    %p234 = scmp.eq.s32.totalorder %s16, 0
    %p235 = por %p233, %p234
    %p236 = scmp.ne.s32.totalorder %s225, %s228
    %p237 = scmp.eq.s32.totalorder %s21, 1
    %p238 = por %p236, %p237
    %p239 = scmp.ne.s32.totalorder %s228, %s229
    %p240 = scmp.eq.s32.totalorder %s21, 0
    %p241 = por %p239, %p240
    %p242 = scmp.ne.s32.totalorder %s228, %s229
    %p243 = scmp.eq.s32.totalorder %s22, 1
    %p244 = por %p242, %p243
    %p246 = scmp.ne.s32.totalorder %s229, %s245
    %p247 = scmp.eq.s32.totalorder %s22, 0
    %p248 = por %p246, %p247
    %p249 = scmp.le.s32.totalorder 1, %s16
    %p250 = scmp.lt.s32.totalorder %s16, 3
    %p251 = pnand %p249, %p250
    %p252 = pneg %p251
    // Predicated region
    $region9: #{_features_forward.1} parent=5 // pred_check
      _
    $region10: #{_features_forward.1} parent=5 // pred_check_branch
      %254 = sbr.rel (%p251) target = $region12
    $region11: #{_features_forward.1} parent=5 // pred_region
      %s255 = ssub.s32 %s16, 1
      // Predicated region
      $region13: #{_features_forward.1} parent=11 // pred_check
        %p256 = pneg %p63
      $region14: #{_features_forward.1} parent=11 // pred_check_branch
        %258 = sbr.rel (%p256) target = $region16
      $region15: #{_features_forward.1} parent=11 // pred_region
        _
      $region16: #{_features_forward.1} parent=11 // pred_fallthru
        _
      // Predicated region
      $region17: #{_features_forward.1} parent=11 // pred_check
        %p259 = pneg %p84
      $region18: #{_features_forward.1} parent=11 // pred_check_branch
        %261 = sbr.rel (%p259) target = $region20
      $region19: #{_features_forward.1} parent=11 // pred_region
        _
      $region20: #{_features_forward.1} parent=11 // pred_fallthru
        _
      // Predicated region
      $region21: #{_features_forward.1} parent=11 // pred_check
        %p262 = pneg %p105
      $region22: #{_features_forward.1} parent=11 // pred_check_branch
        %264 = sbr.rel (%p262) target = $region24
      $region23: #{_features_forward.1} parent=11 // pred_region
        _
      $region24: #{_features_forward.1} parent=11 // pred_fallthru
        _
      // Predicated region
      $region25: #{_features_forward.1} parent=11 // pred_check
        %p265 = pneg %p126
      $region26: #{_features_forward.1} parent=11 // pred_check_branch
        %267 = sbr.rel (%p265) target = $region28
      $region27: #{_features_forward.1} parent=11 // pred_region
        _
      $region28: #{_features_forward.1} parent=11 // pred_fallthru
        _
      // Predicated region
      $region29: #{_features_forward.1} parent=11 // pred_check
        %p268 = pneg %p147
      $region30: #{_features_forward.1} parent=11 // pred_check_branch
        %270 = sbr.rel (%p268) target = $region32
      $region31: #{_features_forward.1} parent=11 // pred_region
        _
      $region32: #{_features_forward.1} parent=11 // pred_fallthru
        _
      // Predicated region
      $region33: #{_features_forward.1} parent=11 // pred_check
        %p271 = pneg %p168
      $region34: #{_features_forward.1} parent=11 // pred_check_branch
        %273 = sbr.rel (%p271) target = $region36
      $region35: #{_features_forward.1} parent=11 // pred_region
        _
      $region36: #{_features_forward.1} parent=11 // pred_fallthru
        _
      // Predicated region
      $region37: #{_features_forward.1} parent=11 // pred_check
        %p274 = pneg %p189
      $region38: #{_features_forward.1} parent=11 // pred_check_branch
        %276 = sbr.rel (%p274) target = $region40
      $region39: #{_features_forward.1} parent=11 // pred_region
        _
      $region40: #{_features_forward.1} parent=11 // pred_fallthru
        _
    $region12: #{_features_forward.1} parent=5 // pred_fallthru
      _
    %p277 = scmp.lt.s32.totalorder %s16, 2
    // Predicated region
    $region41: #{_features_forward.1} parent=5 // pred_check
      %p278 = pneg %p277
    $region42: #{_features_forward.1} parent=5 // pred_check_branch
      %280 = sbr.rel (%p278) target = $region44
    $region43: #{_features_forward.1} parent=5 // pred_region
      // Predicated region
      $region45: #{_features_forward.1} parent=43 // pred_check
        %p281 = pneg %p36
      $region46: #{_features_forward.1} parent=43 // pred_check_branch
        %283 = sbr.rel (%p281) target = $region48
      $region47: #{_features_forward.1} parent=43 // pred_region
        %p284 = scmp.lt.s32.totalorder %s16, 1
        %s285 = scalar_select %p284, %s16, 1
        %s286 = smul.addr %s285, 2
        %s287 = smul.addr %s286, 4
        %s288 = scalar_lea.vmem %s0, %s287
      $region48: #{_features_forward.1} parent=43 // pred_fallthru
        _
    $region44: #{_features_forward.1} parent=5 // pred_fallthru
      _
    %p289 = scmp.le.s32.totalorder 1, %s16
    %p290 = scmp.lt.s32.totalorder %s16, 3
    %p291 = pnand %p289, %p290
    %p292 = pneg %p291
    // Predicated region
    $region49: #{_features_forward.1} parent=5 // pred_check
      _
    $region50: #{_features_forward.1} parent=5 // pred_check_branch
      %294 = sbr.rel (%p291) target = $region52
    $region51: #{_features_forward.1} parent=5 // pred_region
      %s295 = ssub.s32 %s16, 1
      %p296 = scmp.lt.s32.totalorder %s21, 1
      %s297 = scalar_select %p296, %s21, 1
      %s298 = smul.addr %s297, 2
      %s299 = smul.addr %s298, 4
      %s300 = scalar_lea.vmem %s0, %s299
      %p301 = pneg %p42
      %p302 = pneg %p39
      %p303 = pneg %p63
      %p304 = pneg %p60
      %p305 = pneg %p84
      %p306 = pneg %p81
      %p307 = pneg %p105
      %p308 = pneg %p102
      %p309 = pneg %p126
      %p310 = pneg %p123
      %p311 = pneg %p147
      %p312 = pneg %p144
      %p313 = pneg %p168
      %p314 = pneg %p165
      %p315 = pneg %p189
      %p316 = pneg %p186
      %p317 = pneg %p215
      %p318 = pneg %p212
      %p319 = scmp.lt.s32.totalorder %s21, 1
      %s320 = scalar_select %p319, %s21, 1
      %s321 = smul.addr %s320, 2
      %s322 = smul.addr %s321, 8
      %s323 = scalar_lea.vmem %s8, %s322
      %p324 = pneg %p241
      %p325 = pneg %p238
      %p326 = scmp.lt.s32.totalorder %s21, 1
      %s327 = scalar_select %p326, %s21, 1
      %s328 = smul.addr %s327, 2
      %s329 = smul.addr %s328, 8
      %s330 = scalar_lea.vmem %s9, %s329
      %p331 = scmp.lt.s32.totalorder %s21, 1
      %s332 = scalar_select %p331, %s21, 1
      %s333 = smul.addr %s332, 2
      %s334 = smul.addr %s333, 4
      %s335 = scalar_lea.vmem %s0, %s334
      %p336 = scmp.lt.s32.totalorder %s21, 1
      %s337 = scalar_select %p336, %s21, 1
      %s338 = smul.addr %s337, 2
      %s339 = smul.addr %s338, 8
      %s340 = scalar_lea.vmem %s8, %s339
      %p341 = scmp.lt.s32.totalorder %s21, 1
      %s342 = scalar_select %p341, %s21, 1
      %s343 = smul.addr %s342, 2
      %s344 = smul.addr %s343, 8
      %s345 = scalar_lea.vmem %s9, %s344
      %v346 = vld [vmem:[%s335] sm:$0xff]
      %v347 = vld [vmem:[%s1] sm:$0xff]
      %v348 = vld [vmem:[%s2] sm:$0xff]
      %v349 = vld [vmem:[%s5] sm:$0xff]
      %v350 = vld [vmem:[%s5 + $0x8] sm:$0xff]
      %v351 = vld [vmem:[%s5 + $0x10] sm:$0x1]
      %v352 = vld [vmem:[%s5 + $0x18] sm:$0x1]
      %v354 = vcombine.high %v346, %v346
      %355 = vrot.lane.b32.xlu0 %v354, 17
      %v356 = vpop.permute.xlu0 %355
      %358 = vrot.lane.b32.xlu0 %v346, 17
      %v359 = vpop.permute.xlu0 %358
      %vm360 = vcmask 138240
      %v361 = vsel %vm360, %v359, %v356
      %v364 = vsel %vm360, %v356, %v359
      %v365 = vlaneseq
      %v366 = vshrl.u32 %v365, 7
      %v367 = vsub.s32 0, %v366
      %v368 = vrot.slane %v349, %v367
      %v369 = vlaneseq
      %v370 = vshrl.u32 %v369, 7
      %v371 = vsub.s32 0, %v370
      %v372 = vrot.slane %v350, %v371
      %v373 = vmul.f32 %v364, %v368
      %v374 = vmul.f32 %v361, %v372
      %375 = vrot.lane.b32.xlu0 %v354, 16
      %v376 = vpop.permute.xlu0 %375
      %378 = vrot.lane.b32.xlu0 %v346, 16
      %v379 = vpop.permute.xlu0 %378
      %vm380 = vcmask 130048
      %v381 = vsel %vm380, %v379, %v376
      %v384 = vsel %vm380, %v376, %v379
      %v385 = vlaneseq
      %v386 = vshrl.u32 %v385, 7
      %v387 = vsub.s32 1, %v386
      %v388 = vrot.slane %v349, %v387
      %v389 = vlaneseq
      %v390 = vshrl.u32 %v389, 7
      %v391 = vsub.s32 1, %v390
      %v392 = vrot.slane %v350, %v391
      %v393 = vmul.f32 %v384, %v388
      %v394 = vmul.f32 %v381, %v392
      %395 = vrot.lane.b32.xlu0 %v354, 15
      %v396 = vpop.permute.xlu0 %395
      %398 = vrot.lane.b32.xlu0 %v346, 15
      %v399 = vpop.permute.xlu0 %398
      %vm400 = vcmask 121856
      %v401 = vsel %vm400, %v399, %v396
      %v404 = vsel %vm400, %v396, %v399
      %v405 = vlaneseq
      %v406 = vshrl.u32 %v405, 7
      %v407 = vsub.s32 2, %v406
      %v408 = vrot.slane %v349, %v407
      %v409 = vlaneseq
      %v410 = vshrl.u32 %v409, 7
      %v411 = vsub.s32 2, %v410
      %v412 = vrot.slane %v350, %v411
      %v413 = vmul.f32 %v404, %v408
      %v414 = vmul.f32 %v401, %v412
      %415 = vrot.lane.b32.xlu0 %v354, 1
      %v416 = vpop.permute.xlu0 %415
      %418 = vrot.lane.b32.xlu0 %v346, 1
      %v419 = vpop.permute.xlu0 %418
      %vm420 = vcmask 7168
      %v421 = vsel %vm420, %v419, %v416
      %v424 = vsel %vm420, %v416, %v419
      %v425 = vlaneseq
      %v426 = vshrl.u32 %v425, 7
      %v427 = vsub.s32 3, %v426
      %v428 = vrot.slane %v349, %v427
      %v429 = vlaneseq
      %v430 = vshrl.u32 %v429, 7
      %v431 = vsub.s32 3, %v430
      %v432 = vrot.slane %v350, %v431
      %v433 = vmul.f32 %v424, %v428
      %v434 = vmul.f32 %v421, %v432
      %v435 = vlaneseq
      %v436 = vshrl.u32 %v435, 7
      %v437 = vsub.s32 4, %v436
      %v438 = vrot.slane %v349, %v437
      %v439 = vlaneseq
      %v440 = vshrl.u32 %v439, 7
      %v441 = vsub.s32 4, %v440
      %v442 = vrot.slane %v350, %v441
      %v445 = vcombine.low %v438, %v442
      %v447 = vmul.f32 %v346, %v445
      %448 = vrot.lane.b32.xlu0 %v346, 127
      %v449 = vpop.permute.xlu0 %448
      %450 = vrot.lane.b32.xlu0 %v354, 127
      %v451 = vpop.permute.xlu0 %450
      %vm452 = vcmask 1039360
      %v453 = vsel %vm452, %v449, %v451
      %v457 = vsel %vm452, %v451, %v449
      %v458 = vlaneseq
      %v459 = vshrl.u32 %v458, 7
      %v460 = vsub.s32 5, %v459
      %v461 = vrot.slane %v349, %v460
      %v462 = vlaneseq
      %v463 = vshrl.u32 %v462, 7
      %v464 = vsub.s32 5, %v463
      %v465 = vrot.slane %v350, %v464
      %v466 = vmul.f32 %v453, %v461
      %v467 = vmul.f32 %v457, %v465
      %468 = vrot.lane.b32.xlu0 %v346, 113
      %v469 = vpop.permute.xlu0 %468
      %470 = vrot.lane.b32.xlu0 %v354, 113
      %v471 = vpop.permute.xlu0 %470
      %vm472 = vcmask 924672
      %v473 = vsel %vm472, %v469, %v471
      %v477 = vsel %vm472, %v471, %v469
      %v478 = vlaneseq
      %v479 = vshrl.u32 %v478, 7
      %v480 = vsub.s32 6, %v479
      %v481 = vrot.slane %v349, %v480
      %v482 = vlaneseq
      %v483 = vshrl.u32 %v482, 7
      %v484 = vsub.s32 6, %v483
      %v485 = vrot.slane %v350, %v484
      %v486 = vmul.f32 %v473, %v481
      %v487 = vmul.f32 %v477, %v485
      %488 = vrot.lane.b32.xlu0 %v346, 112
      %v489 = vpop.permute.xlu0 %488
      %490 = vrot.lane.b32.xlu0 %v354, 112
      %v491 = vpop.permute.xlu0 %490
      %vm492 = vcmask 916480
      %v493 = vsel %vm492, %v489, %v491
      %v497 = vsel %vm492, %v491, %v489
      %v498 = vlaneseq
      %v499 = vshrl.u32 %v498, 7
      %v500 = vsub.s32 7, %v499
      %v501 = vrot.slane %v349, %v500
      %v502 = vlaneseq
      %v503 = vshrl.u32 %v502, 7
      %v504 = vsub.s32 7, %v503
      %v505 = vrot.slane %v350, %v504
      %v506 = vmul.f32 %v493, %v501
      %v507 = vmul.f32 %v497, %v505
      %508 = vrot.lane.b32.xlu0 %v346, 111
      %v509 = vpop.permute.xlu0 %508
      %510 = vrot.lane.b32.xlu0 %v354, 111
      %v511 = vpop.permute.xlu0 %510
      %vm512 = vcmask 908288
      %v513 = vsel %vm512, %v509, %v511
      %v517 = vsel %vm512, %v511, %v509
      %v518 = vlaneseq
      %v519 = vshrl.u32 %v518, 7
      %v520 = vsub.s32 0, %v519
      %v521 = vrot.slane %v351, %v520
      %v522 = vlaneseq
      %v523 = vshrl.u32 %v522, 7
      %v524 = vsub.s32 0, %v523
      %v525 = vrot.slane %v352, %v524
      %v526 = vmul.f32 %v513, %v521
      %v527 = vmul.f32 %v517, %v525
      %v530 = vrot.slane %v393, 4
      %v531 = vrot.slane %v394, 4
      %v536 = vrot.slane %v433, 4
      %v537 = vrot.slane %v434, 4
      %v541 = vcombine.high %v447, %v447
      %v545 = vrot.slane %v466, 4
      %v546 = vrot.slane %v467, 4
      %v551 = vrot.slane %v506, 4
      %v552 = vrot.slane %v507, 4
      %vm555 = vcmask 1043456
      %v556 = vsel %vm555, %v373, %v530
      %v557 = vsel %vm555, %v374, %v531
      %v558 = vsel %vm555, %v413, %v536
      %v559 = vsel %vm555, %v414, %v537
      %v560 = vsel %vm555, %v447, %v545
      %v561 = vsel %vm555, %v541, %v546
      %v562 = vsel %vm555, %v486, %v551
      %v563 = vsel %vm555, %v487, %v552
      %565 = vset.pattern.permute.xlu0 0
      %566 = vperm.xlu0 %565, %v348
      %v567 = vpop.permute.xlu0 %566
      %vm569 = vcmask 293888
      %v571 = vsel %vm569, %v347, 0
      %v574 = vsel %vm555, %v526, 0
      %v577 = vsel %vm555, %v527, 0
      %579 = vmatprep.subr.mxu0 %v557
      %580 = vmatpush1.msra.mxu0 %v556
      %581 = vmatprep.subr.mxu0 %v559
      %582 = vmatpush1.msra.mxu0 %v558
      %583 = vmatprep.subr.mxu0 %v561
      %584 = vmatpush1.msra.mxu0 %v560
      %585 = vmatprep.subr.mxu0 %v563
      %586 = vmatpush1.msra.mxu0 %v562
      %587 = vmatprep.subr.mxu0 %v577
      %588 = vmatpush1.msra.mxu0 %v574
      %589 = vmatprep.subr.mxu0 0.0
      %590 = vmatpush1.msra.mxu0 0.0
      %591 = vmatprep.subr.mxu0 0.0
      %592 = vmatpush1.msra.mxu0 0.0
      %593 = vmatprep.subr.mxu0 0.0
      %594 = vmatpush1.msra.mxu0 0.0
      %595 = vmatprep.subr.mxu0 0.0
      %596 = vmatpush1.msra.mxu0 0.0
      %597 = vmatprep.subr.mxu0 0.0
      %598 = vmatpush1.msra.mxu0 0.0
      %599 = vmatprep.subr.mxu0 0.0
      %600 = vmatpush1.msra.mxu0 0.0
      %601 = vmatprep.subr.mxu0 0.0
      %602 = vmatpush1.msra.mxu0 0.0
      %603 = vmatprep.subr.mxu0 0.0
      %604 = vmatpush1.msra.mxu0 0.0
      %605 = vmatprep.subr.mxu0 0.0
      %606 = vmatpush1.msra.mxu0 0.0
      %607 = vmatprep.subr.mxu0 0.0
      %608 = vmatpush1.msra.mxu0 0.0
      %609 = vmatprep.subr.mxu0 0.0
      %610 = vmatpush1.msra.mxu0 0.0
      %611 = vmatprep.subr.mxu0 0.0
      %612 = vmatpush1.msra.mxu0 0.0
      %613 = vmatprep.subr.mxu0 0.0
      %614 = vmatpush1.msra.mxu0 0.0
      %615 = vmatprep.subr.mxu0 0.0
      %616 = vmatpush1.msra.mxu0 0.0
      %617 = vmatprep.subr.mxu0 0.0
      %618 = vmatpush1.msra.mxu0 0.0
      %619 = vmatprep.subr.mxu0 0.0
      %620 = vmatpush1.msra.mxu0 0.0
      %621 = vmatprep.subr.mxu0 0.0
      %622 = vmatpush1.msra.mxu0 0.0
      %623 = vmatprep.subr.mxu0 0.0
      %624 = vmatpush1.msra.mxu0 0.0
      %625 = vmatprep.subr.mxu0 0.0
      %626 = vmatpush1.msra.mxu0 0.0
      %627 = vmatprep.subr.mxu0 0.0
      %628 = vmatpush1.msra.mxu0 0.0
      %629 = vmatprep.subr.mxu0 0.0
      %630 = vmatpush1.msra.mxu0 0.0
      %631 = vmatprep.subr.mxu0 0.0
      %632 = vmatpush1.msra.mxu0 0.0
      %633 = vmatprep.subr.mxu0 0.0
      %634 = vmatpush1.msra.mxu0 0.0
      %635 = vmatprep.subr.mxu0 0.0
      %636 = vmatpush1.msra.mxu0 0.0
      %637 = vmatprep.subr.mxu0 0.0
      %638 = vmatpush1.msra.mxu0 0.0
      %639 = vmatprep.subr.mxu0 0.0
      %640 = vmatpush1.msra.mxu0 0.0
      %641 = vmatprep.subr.mxu0 0.0
      %642 = vmatpush1.msra.mxu0 0.0
      %643 = vmatprep.mubr.f32.mxu0 0.0
      %644 = vmatmul.mubr.f32.gmra.mrb[0].mxu0 %v571
      %v645 = vpop.f32.mrb[0].mxu0
      %v646 = vadd.f32 %v567, %v645
      %v647 = vpop.f32.mrb[0].mxu0
      %v648 = vadd.f32 %v567, %v647
      %649 = vdwg.mxu0
      %v650 = vmax.f32 %v646, 0.0
      %v651 = vmax.f32 %v648, 0.0
      %652 = vst [vmem:[%s340] sm:$0xff] %v650
      %653 = vst [vmem:[%s340 + $0x8] sm:$0xff] %v651
      %656 = vrot.lane.b32.xlu0 %v650, 127
      %v657 = vpop.permute.xlu0 %656
      %658 = vrot.lane.b32.xlu0 %v651, 127
      %v659 = vpop.permute.xlu0 %658
      %v660 = vsel %vm452, %v657, %v659
      %v664 = vsel %vm452, %v659, %v657
      %v665 = vmax.f32 %v650, %v660
      %v666 = vmax.f32 %v651, %v664
      %669 = vrot.lane.b32.xlu0 %v665, 112
      %v670 = vpop.permute.xlu0 %669
      %671 = vrot.lane.b32.xlu0 %v666, 112
      %v672 = vpop.permute.xlu0 %671
      %v673 = vsel %vm492, %v670, %v672
      %v677 = vsel %vm492, %v672, %v670
      %v678 = vmax.f32 %v665, %v673
      %v679 = vmax.f32 %v666, %v677
      %v680 = vld [vmem:[%s6] sm:$0xff]
      %v681 = vld [vmem:[%s6 + $0x8] sm:$0xff]
      %v682 = vld [vmem:[%s6 + $0x10] sm:$0xff]
      %v683 = vld [vmem:[%s6 + $0x18] sm:$0xff]
      %v684 = vld [vmem:[%s6 + $0x20] sm:$0xff]
      %v685 = vld [vmem:[%s6 + $0x28] sm:$0xff]
      %v686 = vld [vmem:[%s6 + $0x30] sm:$0xff]
      %v687 = vld [vmem:[%s6 + $0x38] sm:$0xff]
      %v688 = vld [vmem:[%s6 + $0x40] sm:$0xff]
      %v689 = vld [vmem:[%s6 + $0x48] sm:$0xff]
      %v690 = vld [vmem:[%s6 + $0x50] sm:$0xff]
      %v691 = vld [vmem:[%s6 + $0x58] sm:$0xff]
      %v692 = vld [vmem:[%s6 + $0x60] sm:$0xff]
      %v693 = vld [vmem:[%s6 + $0x68] sm:$0xff]
      %v694 = vld [vmem:[%s6 + $0x70] sm:$0xff]
      %v695 = vld [vmem:[%s6 + $0x78] sm:$0xff]
      %v696 = vld [vmem:[%s6 + $0x80] sm:$0xff]
      %v697 = vld [vmem:[%s6 + $0x88] sm:$0xff]
      %v698 = vld [vmem:[%s6 + $0x90] sm:$0xff]
      %v699 = vld [vmem:[%s6 + $0x98] sm:$0xff]
      %v700 = vld [vmem:[%s6 + $0xa0] sm:$0xff]
      %v701 = vld [vmem:[%s6 + $0xa8] sm:$0xff]
      %v702 = vld [vmem:[%s6 + $0xb0] sm:$0xff]
      %v703 = vld [vmem:[%s6 + $0xb8] sm:$0xff]
      %v704 = vld [vmem:[%s6 + $0xc0] sm:$0xff]
      %v705 = vld [vmem:[%s6 + $0xc8] sm:$0xff]
      %v706 = vld [vmem:[%s6 + $0xd0] sm:$0xff]
      %v707 = vld [vmem:[%s6 + $0xd8] sm:$0xff]
      %v708 = vld [vmem:[%s6 + $0xe0] sm:$0xff]
      %v709 = vld [vmem:[%s6 + $0xe8] sm:$0xff]
      %v710 = vld [vmem:[%s6 + $0xf0] sm:$0xff]
      %v711 = vld [vmem:[%s6 + $0xf8] sm:$0xff]
      %712 = vmatprep.subr.mxu0 0.0
      %713 = vmatpush1.msra.mxu0 %v680
      %714 = vmatprep.subr.mxu0 0.0
      %715 = vmatpush1.msra.mxu0 %v681
      %716 = vmatprep.subr.mxu0 0.0
      %717 = vmatpush1.msra.mxu0 %v682
      %718 = vmatprep.subr.mxu0 0.0
      %719 = vmatpush1.msra.mxu0 %v683
      %720 = vmatprep.subr.mxu0 0.0
      %721 = vmatpush1.msra.mxu0 %v684
      %722 = vmatprep.subr.mxu0 0.0
      %723 = vmatpush1.msra.mxu0 %v685
      %724 = vmatprep.subr.mxu0 0.0
      %725 = vmatpush1.msra.mxu0 %v686
      %726 = vmatprep.subr.mxu0 0.0
      %727 = vmatpush1.msra.mxu0 %v687
      %728 = vmatprep.subr.mxu0 0.0
      %729 = vmatpush1.msra.mxu0 %v688
      %730 = vmatprep.subr.mxu0 0.0
      %731 = vmatpush1.msra.mxu0 %v689
      %732 = vmatprep.subr.mxu0 0.0
      %733 = vmatpush1.msra.mxu0 %v690
      %734 = vmatprep.subr.mxu0 0.0
      %735 = vmatpush1.msra.mxu0 %v691
      %736 = vmatprep.subr.mxu0 0.0
      %737 = vmatpush1.msra.mxu0 %v692
      %738 = vmatprep.subr.mxu0 0.0
      %739 = vmatpush1.msra.mxu0 %v693
      %740 = vmatprep.subr.mxu0 0.0
      %741 = vmatpush1.msra.mxu0 %v694
      %742 = vmatprep.subr.mxu0 0.0
      %743 = vmatpush1.msra.mxu0 %v695
      %744 = vmatprep.subr.mxu0 0.0
      %745 = vmatpush1.msra.mxu0 %v696
      %746 = vmatprep.subr.mxu0 0.0
      %747 = vmatpush1.msra.mxu0 %v697
      %748 = vmatprep.subr.mxu0 0.0
      %749 = vmatpush1.msra.mxu0 %v698
      %750 = vmatprep.subr.mxu0 0.0
      %751 = vmatpush1.msra.mxu0 %v699
      %752 = vmatprep.subr.mxu0 0.0
      %753 = vmatpush1.msra.mxu0 %v700
      %754 = vmatprep.subr.mxu0 0.0
      %755 = vmatpush1.msra.mxu0 %v701
      %756 = vmatprep.subr.mxu0 0.0
      %757 = vmatpush1.msra.mxu0 %v702
      %758 = vmatprep.subr.mxu0 0.0
      %759 = vmatpush1.msra.mxu0 %v703
      %760 = vmatprep.subr.mxu0 0.0
      %761 = vmatpush1.msra.mxu0 %v704
      %762 = vmatprep.subr.mxu0 0.0
      %763 = vmatpush1.msra.mxu0 %v705
      %764 = vmatprep.subr.mxu0 0.0
      %765 = vmatpush1.msra.mxu0 %v706
      %766 = vmatprep.subr.mxu0 0.0
      %767 = vmatpush1.msra.mxu0 %v707
      %768 = vmatprep.subr.mxu0 0.0
      %769 = vmatpush1.msra.mxu0 %v708
      %770 = vmatprep.subr.mxu0 0.0
      %771 = vmatpush1.msra.mxu0 %v709
      %772 = vmatprep.subr.mxu0 0.0
      %773 = vmatpush1.msra.mxu0 %v710
      %774 = vmatprep.subr.mxu0 0.0
      %775 = vmatpush1.msra.mxu0 %v711
      %776 = vmatprep.mubr.f32.mxu0 %v679
      %777 = vmatmul.mubr.f32.gmra.mrb[0].mxu0 %v678
      %v778 = vpop.f32.mrb[0].mxu0
      %v779 = vadd.f32 0.0, %v778
      %v780 = vpop.f32.mrb[0].mxu0
      %781 = vdwg.mxu0
      %v782 = vld [vmem:[%s3] sm:$0xff]
      %v783 = vld [vmem:[%s3 + $0x8] sm:$0xff]
      %v784 = vld [vmem:[%s4] sm:$0xff]
      %v785 = vld [vmem:[%s4 + $0x8] sm:$0xff]
      %v786 = vld [vmem:[%s7] sm:$0xff]
      %v787 = vld [vmem:[%s7 + $0x8] sm:$0x1]
      %789 = vrot.lane.b32.xlu0 %v779, 73
      %v790 = vpop.permute.xlu0 %789
      %792 = vrot.lane.b32.xlu0 %v779, 9
      %v793 = vpop.permute.xlu0 %792
      %vm795 = vcmask 72704
      %v796 = vsel %vm795, %v790, %v793
      %v797 = vlaneseq
      %v798 = vshrl.u32 %v797, 7
      %v799 = vsub.s32 0, %v798
      %v800 = vrot.slane %v786, %v799
      %v801 = vmul.f32 %v796, %v800
      %802 = vrot.lane.b32.xlu0 %v779, 72
      %v803 = vpop.permute.xlu0 %802
      %805 = vrot.lane.b32.xlu0 %v779, 8
      %v806 = vpop.permute.xlu0 %805
      %vm808 = vcmask 64512
      %v809 = vsel %vm808, %v803, %v806
      %v810 = vlaneseq
      %v811 = vshrl.u32 %v810, 7
      %v812 = vsub.s32 1, %v811
      %v813 = vrot.slane %v786, %v812
      %v814 = vmul.f32 %v809, %v813
      %815 = vrot.lane.b32.xlu0 %v779, 71
      %v816 = vpop.permute.xlu0 %815
      %818 = vrot.lane.b32.xlu0 %v779, 7
      %v819 = vpop.permute.xlu0 %818
      %vm821 = vcmask 56320
      %v822 = vsel %vm821, %v816, %v819
      %v823 = vlaneseq
      %v824 = vshrl.u32 %v823, 7
      %v825 = vsub.s32 2, %v824
      %v826 = vrot.slane %v786, %v825
      %v827 = vmul.f32 %v822, %v826
      %828 = vrot.lane.b32.xlu0 %v779, 65
      %v829 = vpop.permute.xlu0 %828
      %831 = vrot.lane.b32.xlu0 %v779, 1
      %v832 = vpop.permute.xlu0 %831
      %v834 = vsel %vm420, %v829, %v832
      %v835 = vlaneseq
      %v836 = vshrl.u32 %v835, 7
      %v837 = vsub.s32 3, %v836
      %v838 = vrot.slane %v786, %v837
      %v839 = vmul.f32 %v834, %v838
      %v840 = vlaneseq
      %v841 = vshrl.u32 %v840, 7
      %v842 = vsub.s32 4, %v841
      %v843 = vrot.slane %v786, %v842
      %v844 = vmul.f32 %v779, %v843
      %845 = vrot.lane.b32.xlu0 %v779, 127
      %v846 = vpop.permute.xlu0 %845
      %848 = vrot.lane.b32.xlu0 %v779, 63
      %v849 = vpop.permute.xlu0 %848
      %vm851 = vcmask 515072
      %v852 = vsel %vm851, %v846, %v849
      %v853 = vlaneseq
      %v854 = vshrl.u32 %v853, 7
      %v855 = vsub.s32 5, %v854
      %v856 = vrot.slane %v786, %v855
      %v857 = vmul.f32 %v852, %v856
      %858 = vrot.lane.b32.xlu0 %v779, 121
      %v859 = vpop.permute.xlu0 %858
      %861 = vrot.lane.b32.xlu0 %v779, 57
      %v862 = vpop.permute.xlu0 %861
      %vm864 = vcmask 465920
      %v865 = vsel %vm864, %v859, %v862
      %v866 = vlaneseq
      %v867 = vshrl.u32 %v866, 7
      %v868 = vsub.s32 6, %v867
      %v869 = vrot.slane %v786, %v868
      %v870 = vmul.f32 %v865, %v869
      %871 = vrot.lane.b32.xlu0 %v779, 120
      %v872 = vpop.permute.xlu0 %871
      %874 = vrot.lane.b32.xlu0 %v779, 56
      %v875 = vpop.permute.xlu0 %874
      %vm877 = vcmask 457728
      %v878 = vsel %vm877, %v872, %v875
      %v879 = vlaneseq
      %v880 = vshrl.u32 %v879, 7
      %v881 = vsub.s32 7, %v880
      %v882 = vrot.slane %v786, %v881
      %v883 = vmul.f32 %v878, %v882
      %884 = vrot.lane.b32.xlu0 %v779, 119
      %v885 = vpop.permute.xlu0 %884
      %887 = vrot.lane.b32.xlu0 %v779, 55
      %v888 = vpop.permute.xlu0 %887
      %vm890 = vcmask 449536
      %v891 = vsel %vm890, %v885, %v888
      %v892 = vlaneseq
      %v893 = vshrl.u32 %v892, 7
      %v894 = vsub.s32 0, %v893
      %v895 = vrot.slane %v787, %v894
      %v896 = vmul.f32 %v891, %v895
      %898 = vset.pattern.permute.xlu0 0
      %899 = vperm.xlu0 %898, %v784
      %v900 = vpop.permute.xlu0 %899
      %903 = vset.pattern.permute.xlu0 0
      %904 = vperm.xlu0 %903, %v785
      %v905 = vpop.permute.xlu0 %904
      %vm907 = vcmask 588800
      %v909 = vsel %vm907, %v782, 0
      %v912 = vsel %vm907, %v783, 0
      %914 = vmatprep.subr.mxu0 0.0
      %915 = vmatpush1.msra.mxu0 %v801
      %916 = vmatprep.subr.mxu0 0.0
      %917 = vmatpush1.msra.mxu0 %v814
      %918 = vmatprep.subr.mxu0 0.0
      %919 = vmatpush1.msra.mxu0 %v827
      %920 = vmatprep.subr.mxu0 0.0
      %921 = vmatpush1.msra.mxu0 %v839
      %922 = vmatprep.subr.mxu0 0.0
      %923 = vmatpush1.msra.mxu0 %v844
      %924 = vmatprep.subr.mxu0 0.0
      %925 = vmatpush1.msra.mxu0 %v857
      %926 = vmatprep.subr.mxu0 0.0
      %927 = vmatpush1.msra.mxu0 %v870
      %928 = vmatprep.subr.mxu0 0.0
      %929 = vmatpush1.msra.mxu0 %v883
      %930 = vmatprep.subr.mxu0 0.0
      %931 = vmatpush1.msra.mxu0 %v896
      %932 = vmatprep.subr.mxu0 0.0
      %933 = vmatpush1.msra.mxu0 0.0
      %934 = vmatprep.subr.mxu0 0.0
      %935 = vmatpush1.msra.mxu0 0.0
      %936 = vmatprep.subr.mxu0 0.0
      %937 = vmatpush1.msra.mxu0 0.0
      %938 = vmatprep.subr.mxu0 0.0
      %939 = vmatpush1.msra.mxu0 0.0
      %940 = vmatprep.subr.mxu0 0.0
      %941 = vmatpush1.msra.mxu0 0.0
      %942 = vmatprep.subr.mxu0 0.0
      %943 = vmatpush1.msra.mxu0 0.0
      %944 = vmatprep.subr.mxu0 0.0
      %945 = vmatpush1.msra.mxu0 0.0
      %946 = vmatprep.subr.mxu0 0.0
      %947 = vmatpush1.msra.mxu0 0.0
      %948 = vmatprep.subr.mxu0 0.0
      %949 = vmatpush1.msra.mxu0 0.0
      %950 = vmatprep.subr.mxu0 0.0
      %951 = vmatpush1.msra.mxu0 0.0
      %952 = vmatprep.subr.mxu0 0.0
      %953 = vmatpush1.msra.mxu0 0.0
      %954 = vmatprep.subr.mxu0 0.0
      %955 = vmatpush1.msra.mxu0 0.0
      %956 = vmatprep.subr.mxu0 0.0
      %957 = vmatpush1.msra.mxu0 0.0
      %958 = vmatprep.subr.mxu0 0.0
      %959 = vmatpush1.msra.mxu0 0.0
      %960 = vmatprep.subr.mxu0 0.0
      %961 = vmatpush1.msra.mxu0 0.0
      %962 = vmatprep.subr.mxu0 0.0
      %963 = vmatpush1.msra.mxu0 0.0
      %964 = vmatprep.subr.mxu0 0.0
      %965 = vmatpush1.msra.mxu0 0.0
      %966 = vmatprep.subr.mxu0 0.0
      %967 = vmatpush1.msra.mxu0 0.0
      %968 = vmatprep.subr.mxu0 0.0
      %969 = vmatpush1.msra.mxu0 0.0
      %970 = vmatprep.subr.mxu0 0.0
      %971 = vmatpush1.msra.mxu0 0.0
      %972 = vmatprep.subr.mxu0 0.0
      %973 = vmatpush1.msra.mxu0 0.0
      %974 = vmatprep.subr.mxu0 0.0
      %975 = vmatpush1.msra.mxu0 0.0
      %976 = vmatprep.subr.mxu0 0.0
      %977 = vmatpush1.msra.mxu0 0.0
      %978 = vmatprep.mubr.f32.mxu0 0.0
      %979 = vmatmul.mubr.f32.gmra.mrb[0].mxu0 %v909
      %v980 = vpop.f32.mrb[0].mxu0
      %v981 = vadd.f32 %v900, %v980
      %v982 = vpop.f32.mrb[0].mxu0
      %983 = vmatprep.mubr.f32.mxu0 0.0
      %984 = vmatmul.mubr.f32.gmra.mrb[0].mxu0 %v912
      %v985 = vpop.f32.mrb[0].mxu0
      %v986 = vadd.f32 %v905, %v985
      %v987 = vpop.f32.mrb[0].mxu0
      %988 = vdwg.mxu0
      %v989 = vmax.f32 %v981, 0.0
      %v990 = vmax.f32 %v986, 0.0
      %vm991 = vcmask 523264
      %992 = vst.msk [vmem:[%s345] sm:$0xff] %vm991, %v989
      %993 = vst.msk [vmem:[%s345 + $0x8] sm:$0xff] %vm991, %v990
      %p994 = scmp.lt.s32.totalorder %s21, 1
      %s995 = scalar_select %p994, %s21, 1
      %s996 = smul.addr %s995, 2
      %s997 = smul.addr %s996, 8
      %s998 = scalar_lea.vmem %s8, %s997
      %p999 = scmp.lt.s32.totalorder %s21, 1
      %s1000 = scalar_select %p999, %s21, 1
      %s1001 = smul.addr %s1000, 2
      %s1002 = smul.addr %s1001, 8
      %s1003 = scalar_lea.vmem %s9, %s1002
      // Predicated region
      $region53: #{_features_forward.1} parent=51 // pred_check
        %p1004 = pneg %p212
      $region54: #{_features_forward.1} parent=51 // pred_check_branch
        %1006 = sbr.rel (%p1004) target = $region56
      $region55: #{_features_forward.1} parent=51 // pred_region
        _
      $region56: #{_features_forward.1} parent=51 // pred_fallthru
        _
      // Predicated region
      $region57: #{_features_forward.1} parent=51 // pred_check
        %p1007 = pneg %p238
      $region58: #{_features_forward.1} parent=51 // pred_check_branch
        %1009 = sbr.rel (%p1007) target = $region60
      $region59: #{_features_forward.1} parent=51 // pred_region
        _
      $region60: #{_features_forward.1} parent=51 // pred_fallthru
        _
    $region52: #{_features_forward.1} parent=5 // pred_fallthru
      _
    %p1010 = scmp.le.s32.totalorder 2, %s16
    // Predicated region
    $region61: #{_features_forward.1} parent=5 // pred_check
      %p1011 = pneg %p1010
    $region62: #{_features_forward.1} parent=5 // pred_check_branch
      %1013 = sbr.rel (%p1011) target = $region64
    $region63: #{_features_forward.1} parent=5 // pred_region
      %s1014 = ssub.s32 %s16, 2
      // Predicated region
      $region65: #{_features_forward.1} parent=63 // pred_check
        %p1015 = pneg %p218
      $region66: #{_features_forward.1} parent=63 // pred_check_branch
        %1017 = sbr.rel (%p1015) target = $region68
      $region67: #{_features_forward.1} parent=63 // pred_region
        %p1018 = scmp.lt.s32.totalorder %s22, 1
        %s1019 = scalar_select %p1018, %s22, 1
        %s1020 = smul.addr %s1019, 2
        %s1021 = smul.addr %s1020, 8
        %s1022 = scalar_lea.vmem %s8, %s1021
      $region68: #{_features_forward.1} parent=63 // pred_fallthru
        _
      // Predicated region
      $region69: #{_features_forward.1} parent=63 // pred_check
        %p1023 = pneg %p244
      $region70: #{_features_forward.1} parent=63 // pred_check_branch
        %1025 = sbr.rel (%p1023) target = $region72
      $region71: #{_features_forward.1} parent=63 // pred_region
        %p1026 = scmp.lt.s32.totalorder %s22, 1
        %s1027 = scalar_select %p1026, %s22, 1
        %s1028 = smul.addr %s1027, 2
        %s1029 = smul.addr %s1028, 8
        %s1030 = scalar_lea.vmem %s9, %s1029
      $region72: #{_features_forward.1} parent=63 // pred_fallthru
        _
    $region64: #{_features_forward.1} parent=5 // pred_fallthru
      _
  $region6: #{_features_forward.1} parent=0 // loop_footer
    %s20 = sadd.s32 1, %s16
  $region7: #{_features_forward.1} parent=0 // loop_footer_branch
    %15 = sbr.rel target = $region3
  $region8: #{_features_forward.1} parent=0 // loop_exit
    _

</llo_original>
